<compile_context>
chip_gen: v7x
topology: tpu7x:2x2x1
jax: 0.10.0
libtpu: 0.0.40
codegen_flags: <defaults>
</compile_context>

<pallas_src>
import math

import jax
import jax.numpy as jnp
from jax.experimental import pallas as pl
from jax.experimental.pallas import tpu as pltpu


def _make_kernel(C, L, d):
    inv_sqrt2 = 1.0 / math.sqrt(2.0)

    def kernel(xp_ref, w0_ref, w1_ref, w2_ref, bc_ref,
               wr_ref, br_ref, ws_ref, bs_ref,
               res_ref, skip_ref):
        # xp_ref: (1, C, L + 2d) zero-padded input; static lane-offset loads give the taps.
        xl = xp_ref[0, :, pl.ds(0, L)]          # x[t - d]
        xc = xp_ref[0, :, pl.ds(d, L)]          # x[t]
        xr = xp_ref[0, :, pl.ds(2 * d, L)]      # x[t + d]

        # Dilated conv (kernel=3) as three channel-matmuls summed on the MXU.
        y = (jnp.dot(w0_ref[...], xl, preferred_element_type=jnp.float32)
             + jnp.dot(w1_ref[...], xc, preferred_element_type=jnp.float32)
             + jnp.dot(w2_ref[...], xr, preferred_element_type=jnp.float32)
             + bc_ref[...])                      # (2C, L)

        gate = y[:C, :]
        filt = y[C:, :]
        # sigmoid(x) = 0.5 * (tanh(x/2) + 1): stable, no exp overflow, EUP path.
        sig = 0.5 * (jnp.tanh(0.5 * gate) + 1.0)
        z = sig * jnp.tanh(filt)                 # (C, L)

        resid = jnp.dot(wr_ref[...], z, preferred_element_type=jnp.float32) + br_ref[...]
        skip = jnp.dot(ws_ref[...], z, preferred_element_type=jnp.float32) + bs_ref[...]

        res_ref[0] = (xc + resid) * inv_sqrt2
        skip_ref[0] = skip

    return kernel


def residual_block_init(x, w_dil, b_dil, w_res, b_res, w_skip, b_skip, dilation):
    """Forward pass of ResidualBlock_init.

    x:      (B, C, L) f32
    w_dil:  (2C, C, 3), b_dil: (2C,)   -- dilated conv, padding = dilation
    w_res:  (C, C, 1),  b_res: (C,)    -- output_residual (1x1 conv)
    w_skip: (C, C, 1),  b_skip: (C,)   -- output_projection (1x1 conv)
    returns ((x + residual)/sqrt(2), skip), both (B, C, L) f32.
    """
    B, C, L = x.shape
    d = int(dilation)

    x = x.astype(jnp.float32)
    # Zero-pad once along L (== the conv's zero padding); the kernel slices the three taps.
    xp = jnp.pad(x, ((0, 0), (0, 0), (d, d)))

    # Conv weight (out, in, k): tap k multiplies x[t + (k-1)*d].
    w0 = w_dil[:, :, 0].astype(jnp.float32)
    w1 = w_dil[:, :, 1].astype(jnp.float32)
    w2 = w_dil[:, :, 2].astype(jnp.float32)
    bc = b_dil.reshape(2 * C, 1).astype(jnp.float32)
    wr = w_res[:, :, 0].astype(jnp.float32)
    br = b_res.reshape(C, 1).astype(jnp.float32)
    ws = w_skip[:, :, 0].astype(jnp.float32)
    bs = b_skip.reshape(C, 1).astype(jnp.float32)

    kernel = _make_kernel(C, L, d)

    # Weights/biases: same block index every grid step -> loaded once, stay VMEM-resident.
    const = lambda b: (0, 0)

    res, skip = pl.pallas_call(
        kernel,
        out_shape=(jax.ShapeDtypeStruct((B, C, L), jnp.float32),
                   jax.ShapeDtypeStruct((B, C, L), jnp.float32)),
        grid_spec=pltpu.PrefetchScalarGridSpec(
            num_scalar_prefetch=0,
            grid=(B,),
            in_specs=[
                pl.BlockSpec((1, C, L + 2 * d), lambda b: (b, 0, 0)),  # padded x
                pl.BlockSpec((2 * C, C), const),                       # w_dil tap 0
                pl.BlockSpec((2 * C, C), const),                       # w_dil tap 1
                pl.BlockSpec((2 * C, C), const),                       # w_dil tap 2
                pl.BlockSpec((2 * C, 1), const),                       # b_dil
                pl.BlockSpec((C, C), const),                           # w_res
                pl.BlockSpec((C, 1), const),                           # b_res
                pl.BlockSpec((C, C), const),                           # w_skip
                pl.BlockSpec((C, 1), const),                           # b_skip
            ],
            out_specs=(
                pl.BlockSpec((1, C, L), lambda b: (b, 0, 0)),
                pl.BlockSpec((1, C, L), lambda b: (b, 0, 0)),
            ),
        ),
        compiler_params=pltpu.CompilerParams(
            dimension_semantics=("parallel",)),
    )(xp, w0, w1, w2, bc, wr, br, ws, bs)
    return res, skip


def _reference(x, w_dil, b_dil, w_res, b_res, w_skip, b_skip, d):
    """Pure-JAX reference matching the PyTorch module."""
    C = x.shape[1]
    y = jax.lax.conv_general_dilated(
        x, w_dil,
        window_strides=(1,),
        padding=[(d, d)],
        rhs_dilation=(d,),
        dimension_numbers=("NCH", "OIH", "NCH"),
    ) + b_dil[None, :, None]
    gate, filt = y[:, :C, :], y[:, C:, :]
    z = jax.nn.sigmoid(gate) * jnp.tanh(filt)
    resid = jnp.einsum("oc,bcl->bol", w_res[:, :, 0], z) + b_res[None, :, None]
    skip = jnp.einsum("oc,bcl->bol", w_skip[:, :, 0], z) + b_skip[None, :, None]
    return (x + resid) / jnp.sqrt(2.0), skip


if __name__ == "__main__":
    key = jax.random.PRNGKey(0)
    B, C, L, dilation = 2, 8, 32, 2

    ks = jax.random.split(key, 7)
    # Kaiming-normal-ish conv weights, small uniform biases (values only matter for the check).
    w_dil = jax.random.normal(ks[0], (2 * C, C, 3), jnp.float32) * math.sqrt(2.0 / (C * 3))
    b_dil = jax.random.uniform(ks[1], (2 * C,), jnp.float32, -0.1, 0.1)
    w_res = jax.random.normal(ks[2], (C, C, 1), jnp.float32) * math.sqrt(2.0 / C)
    b_res = jax.random.uniform(ks[3], (C,), jnp.float32, -0.1, 0.1)
    w_skip = jax.random.normal(ks[4], (C, C, 1), jnp.float32) * math.sqrt(2.0 / C)
    b_skip = jax.random.uniform(ks[5], (C,), jnp.float32, -0.1, 0.1)
    x = jax.random.normal(ks[6], (B, C, L), jnp.float32)

    res, skip = residual_block_init(x, w_dil, b_dil, w_res, b_res, w_skip, b_skip, dilation)
    res = jax.block_until_ready(res)
    skip = jax.block_until_ready(skip)

    ref_res, ref_skip = _reference(x, w_dil, b_dil, w_res, b_res, w_skip, b_skip, dilation)
    assert res.shape == (B, C, L) and skip.shape == (B, C, L)
    assert jnp.allclose(res, ref_res, atol=1e-4, rtol=1e-4), "residual output mismatch vs reference"
    assert jnp.allclose(skip, ref_skip, atol=1e-4, rtol=1e-4), "skip output mismatch vs reference"
    print("KERNEL_OK")
</pallas_src>

<mosaic_0001>
module attributes {stable_mosaic.version = 11 : i64} {
  func.func @kernel(%arg0: i32, %arg1: memref<1x8x36xf32, #tpu.memory_space<vmem>>, %arg2: memref<16x8xf32, #tpu.memory_space<vmem>>, %arg3: memref<16x8xf32, #tpu.memory_space<vmem>>, %arg4: memref<16x8xf32, #tpu.memory_space<vmem>>, %arg5: memref<16x1xf32, #tpu.memory_space<vmem>>, %arg6: memref<8x8xf32, #tpu.memory_space<vmem>>, %arg7: memref<8x1xf32, #tpu.memory_space<vmem>>, %arg8: memref<8x8xf32, #tpu.memory_space<vmem>>, %arg9: memref<8x1xf32, #tpu.memory_space<vmem>>, %arg10: memref<1x8x32xf32, #tpu.memory_space<vmem>>, %arg11: memref<1x8x32xf32, #tpu.memory_space<vmem>>) attributes {dimension_semantics = [#tpu.dimension_semantics<parallel>], iteration_bounds = array<i64: 2>, scalar_prefetch = 0 : i64, scratch_operands = 0 : i64, tpu.core_type = #tpu.core_type<tc>, window_params = [{transform_indices = @transform_0, window_bounds = array<i64: 1, 8, 36>}, {pipeline_mode = #tpu.pipeline_mode<synchronous>, transform_indices = @transform_1, window_bounds = array<i64: 16, 8>}, {pipeline_mode = #tpu.pipeline_mode<synchronous>, transform_indices = @transform_2, window_bounds = array<i64: 16, 8>}, {pipeline_mode = #tpu.pipeline_mode<synchronous>, transform_indices = @transform_3, window_bounds = array<i64: 16, 8>}, {pipeline_mode = #tpu.pipeline_mode<synchronous>, transform_indices = @transform_4, window_bounds = array<i64: 16, 1>}, {pipeline_mode = #tpu.pipeline_mode<synchronous>, transform_indices = @transform_5, window_bounds = array<i64: 8, 8>}, {pipeline_mode = #tpu.pipeline_mode<synchronous>, transform_indices = @transform_6, window_bounds = array<i64: 8, 1>}, {pipeline_mode = #tpu.pipeline_mode<synchronous>, transform_indices = @transform_7, window_bounds = array<i64: 8, 8>}, {pipeline_mode = #tpu.pipeline_mode<synchronous>, transform_indices = @transform_8, window_bounds = array<i64: 8, 1>}, {transform_indices = @transform_9, window_bounds = array<i64: 1, 8, 32>}, {transform_indices = @transform_10, window_bounds = array<i64: 1, 8, 32>}]} {
    %c0 = arith.constant 0 : index
    %c0_0 = arith.constant 0 : index
    %c0_1 = arith.constant 0 : index
    %0 = vector.load %arg1[%c0, %c0_0, %c0_1] : memref<1x8x36xf32, #tpu.memory_space<vmem>>, vector<1x8x32xf32>
    %1 = vector.shape_cast %0 : vector<1x8x32xf32> to vector<8x32xf32>
    %c0_2 = arith.constant 0 : index
    %c0_3 = arith.constant 0 : index
    %c2 = arith.constant 2 : index
    %2 = vector.load %arg1[%c0_2, %c0_3, %c2] : memref<1x8x36xf32, #tpu.memory_space<vmem>>, vector<1x8x32xf32>
    %3 = vector.shape_cast %2 : vector<1x8x32xf32> to vector<8x32xf32>
    %c0_4 = arith.constant 0 : index
    %c0_5 = arith.constant 0 : index
    %c4 = arith.constant 4 : index
    %4 = vector.load %arg1[%c0_4, %c0_5, %c4] : memref<1x8x36xf32, #tpu.memory_space<vmem>>, vector<1x8x32xf32>
    %5 = vector.shape_cast %4 : vector<1x8x32xf32> to vector<8x32xf32>
    %c0_6 = arith.constant 0 : index
    %c0_7 = arith.constant 0 : index
    %6 = vector.load %arg2[%c0_6, %c0_7] : memref<16x8xf32, #tpu.memory_space<vmem>>, vector<16x8xf32>
    %cst = arith.constant dense<0.000000e+00> : vector<16x32xf32>
    %7 = tpu.matmul %6, %1, %cst {dimension_numbers = #tpu.dot_dimension_numbers<[1], [0], [0], [1], [0, 0, 1, 1], [], []>} : vector<16x8xf32>, vector<8x32xf32>, vector<16x32xf32> -> vector<16x32xf32>
    %c0_8 = arith.constant 0 : index
    %c0_9 = arith.constant 0 : index
    %8 = vector.load %arg3[%c0_8, %c0_9] : memref<16x8xf32, #tpu.memory_space<vmem>>, vector<16x8xf32>
    %cst_10 = arith.constant dense<0.000000e+00> : vector<16x32xf32>
    %9 = tpu.matmul %8, %3, %cst_10 {dimension_numbers = #tpu.dot_dimension_numbers<[1], [0], [0], [1], [0, 0, 1, 1], [], []>} : vector<16x8xf32>, vector<8x32xf32>, vector<16x32xf32> -> vector<16x32xf32>
    %10 = arith.addf %7, %9 : vector<16x32xf32>
    %c0_11 = arith.constant 0 : index
    %c0_12 = arith.constant 0 : index
    %11 = vector.load %arg4[%c0_11, %c0_12] : memref<16x8xf32, #tpu.memory_space<vmem>>, vector<16x8xf32>
    %cst_13 = arith.constant dense<0.000000e+00> : vector<16x32xf32>
    %12 = tpu.matmul %11, %5, %cst_13 {dimension_numbers = #tpu.dot_dimension_numbers<[1], [0], [0], [1], [0, 0, 1, 1], [], []>} : vector<16x8xf32>, vector<8x32xf32>, vector<16x32xf32> -> vector<16x32xf32>
    %13 = arith.addf %10, %12 : vector<16x32xf32>
    %c0_14 = arith.constant 0 : index
    %c0_15 = arith.constant 0 : index
    %14 = vector.load %arg5[%c0_14, %c0_15] : memref<16x1xf32, #tpu.memory_space<vmem>>, vector<16x1xf32>
    %15 = vector.broadcast %14 : vector<16x1xf32> to vector<16x32xf32>
    %16 = arith.addf %13, %15 : vector<16x32xf32>
    %17 = vector.extract_strided_slice %16 {offsets = [0, 0], sizes = [8, 32], strides = [1, 1]} : vector<16x32xf32> to vector<8x32xf32>
    %18 = vector.extract_strided_slice %16 {offsets = [8, 0], sizes = [8, 32], strides = [1, 1]} : vector<16x32xf32> to vector<8x32xf32>
    %cst_16 = arith.constant 5.000000e-01 : f32
    %19 = vector.broadcast %cst_16 : f32 to vector<8x32xf32>
    %20 = arith.mulf %19, %17 : vector<8x32xf32>
    %21 = math.tanh %20 : vector<8x32xf32>
    %cst_17 = arith.constant 1.000000e+00 : f32
    %22 = vector.broadcast %cst_17 : f32 to vector<8x32xf32>
    %23 = arith.addf %21, %22 : vector<8x32xf32>
    %cst_18 = arith.constant 5.000000e-01 : f32
    %24 = vector.broadcast %cst_18 : f32 to vector<8x32xf32>
    %25 = arith.mulf %24, %23 : vector<8x32xf32>
    %26 = math.tanh %18 : vector<8x32xf32>
    %27 = arith.mulf %25, %26 : vector<8x32xf32>
    %c0_19 = arith.constant 0 : index
    %c0_20 = arith.constant 0 : index
    %28 = vector.load %arg6[%c0_19, %c0_20] : memref<8x8xf32, #tpu.memory_space<vmem>>, vector<8x8xf32>
    %cst_21 = arith.constant dense<0.000000e+00> : vector<8x32xf32>
    %29 = tpu.matmul %28, %27, %cst_21 {dimension_numbers = #tpu.dot_dimension_numbers<[1], [0], [0], [1], [0, 0, 1, 1], [], []>} : vector<8x8xf32>, vector<8x32xf32>, vector<8x32xf32> -> vector<8x32xf32>
    %c0_22 = arith.constant 0 : index
    %c0_23 = arith.constant 0 : index
    %30 = vector.load %arg7[%c0_22, %c0_23] : memref<8x1xf32, #tpu.memory_space<vmem>>, vector<8x1xf32>
    %31 = vector.broadcast %30 : vector<8x1xf32> to vector<8x32xf32>
    %32 = arith.addf %29, %31 : vector<8x32xf32>
    %c0_24 = arith.constant 0 : index
    %c0_25 = arith.constant 0 : index
    %33 = vector.load %arg8[%c0_24, %c0_25] : memref<8x8xf32, #tpu.memory_space<vmem>>, vector<8x8xf32>
    %cst_26 = arith.constant dense<0.000000e+00> : vector<8x32xf32>
    %34 = tpu.matmul %33, %27, %cst_26 {dimension_numbers = #tpu.dot_dimension_numbers<[1], [0], [0], [1], [0, 0, 1, 1], [], []>} : vector<8x8xf32>, vector<8x32xf32>, vector<8x32xf32> -> vector<8x32xf32>
    %c0_27 = arith.constant 0 : index
    %c0_28 = arith.constant 0 : index
    %35 = vector.load %arg9[%c0_27, %c0_28] : memref<8x1xf32, #tpu.memory_space<vmem>>, vector<8x1xf32>
    %36 = vector.broadcast %35 : vector<8x1xf32> to vector<8x32xf32>
    %37 = arith.addf %34, %36 : vector<8x32xf32>
    %38 = arith.addf %3, %32 : vector<8x32xf32>
    %cst_29 = arith.constant 0.707106769 : f32
    %39 = vector.broadcast %cst_29 : f32 to vector<8x32xf32>
    %40 = arith.mulf %38, %39 : vector<8x32xf32>
    %c0_30 = arith.constant 0 : index
    %c0_31 = arith.constant 0 : index
    %c0_32 = arith.constant 0 : index
    %41 = vector.load %arg10[%c0_30, %c0_31, %c0_32] : memref<1x8x32xf32, #tpu.memory_space<vmem>>, vector<1x8x32xf32>
    %42 = vector.shape_cast %41 : vector<1x8x32xf32> to vector<8x32xf32>
    %43 = vector.shape_cast %40 : vector<8x32xf32> to vector<1x8x32xf32>
    tpu.vector_store %arg10[%c0_30, %c0_31, %c0_32], %43 {strides = array<i32>} : memref<1x8x32xf32, #tpu.memory_space<vmem>>, vector<1x8x32xf32>,
    %c0_33 = arith.constant 0 : index
    %c0_34 = arith.constant 0 : index
    %c0_35 = arith.constant 0 : index
    %44 = vector.load %arg11[%c0_33, %c0_34, %c0_35] : memref<1x8x32xf32, #tpu.memory_space<vmem>>, vector<1x8x32xf32>
    %45 = vector.shape_cast %44 : vector<1x8x32xf32> to vector<8x32xf32>
    %46 = vector.shape_cast %37 : vector<8x32xf32> to vector<1x8x32xf32>
    tpu.vector_store %arg11[%c0_33, %c0_34, %c0_35], %46 {strides = array<i32>} : memref<1x8x32xf32, #tpu.memory_space<vmem>>, vector<1x8x32xf32>,
    return
  }
  func.func @transform_0(%arg0: i32) -> (i32, i32, i32) {
    %c0_i32 = arith.constant 0 : i32
    %c0_i32_0 = arith.constant 0 : i32
    %c0_i32_1 = arith.constant 0 : i32
    return %arg0, %c0_i32, %c0_i32_0 : i32, i32, i32
  }
  func.func @transform_1(%arg0: i32) -> (i32, i32) {
    %c0_i32 = arith.constant 0 : i32
    %c0_i32_0 = arith.constant 0 : i32
    %c0_i32_1 = arith.constant 0 : i32
    return %c0_i32, %c0_i32_0 : i32, i32
  }
  func.func @transform_2(%arg0: i32) -> (i32, i32) {
    %c0_i32 = arith.constant 0 : i32
    %c0_i32_0 = arith.constant 0 : i32
    %c0_i32_1 = arith.constant 0 : i32
    return %c0_i32, %c0_i32_0 : i32, i32
  }
  func.func @transform_3(%arg0: i32) -> (i32, i32) {
    %c0_i32 = arith.constant 0 : i32
    %c0_i32_0 = arith.constant 0 : i32
    %c0_i32_1 = arith.constant 0 : i32
    return %c0_i32, %c0_i32_0 : i32, i32
  }
  func.func @transform_4(%arg0: i32) -> (i32, i32) {
    %c0_i32 = arith.constant 0 : i32
    %c0_i32_0 = arith.constant 0 : i32
    %c0_i32_1 = arith.constant 0 : i32
    return %c0_i32, %c0_i32_0 : i32, i32
  }
  func.func @transform_5(%arg0: i32) -> (i32, i32) {
    %c0_i32 = arith.constant 0 : i32
    %c0_i32_0 = arith.constant 0 : i32
    %c0_i32_1 = arith.constant 0 : i32
    return %c0_i32, %c0_i32_0 : i32, i32
  }
  func.func @transform_6(%arg0: i32) -> (i32, i32) {
    %c0_i32 = arith.constant 0 : i32
    %c0_i32_0 = arith.constant 0 : i32
    %c0_i32_1 = arith.constant 0 : i32
    return %c0_i32, %c0_i32_0 : i32, i32
  }
  func.func @transform_7(%arg0: i32) -> (i32, i32) {
    %c0_i32 = arith.constant 0 : i32
    %c0_i32_0 = arith.constant 0 : i32
    %c0_i32_1 = arith.constant 0 : i32
    return %c0_i32, %c0_i32_0 : i32, i32
  }
  func.func @transform_8(%arg0: i32) -> (i32, i32) {
    %c0_i32 = arith.constant 0 : i32
    %c0_i32_0 = arith.constant 0 : i32
    %c0_i32_1 = arith.constant 0 : i32
    return %c0_i32, %c0_i32_0 : i32, i32
  }
  func.func @transform_9(%arg0: i32) -> (i32, i32, i32) {
    %c0_i32 = arith.constant 0 : i32
    %c0_i32_0 = arith.constant 0 : i32
    %c0_i32_1 = arith.constant 0 : i32
    return %arg0, %c0_i32, %c0_i32_0 : i32, i32, i32
  }
  func.func @transform_10(%arg0: i32) -> (i32, i32, i32) {
    %c0_i32 = arith.constant 0 : i32
    %c0_i32_0 = arith.constant 0 : i32
    %c0_i32_1 = arith.constant 0 : i32
    return %arg0, %c0_i32, %c0_i32_0 : i32, i32, i32
  }
}

</mosaic_0001>

<llo_original>
// kernel: tpu_custom_call.1
$region0: #{tpu_custom_call.1}
  #allocation0 [shape = 'u32[]', space=smem, size = 0x4, offset = 0x4, fixed_abs, tag = 'smem constant byte address 0x4 - core index']
  #allocation1 [shape = 'u32[144,128]{1,0:T(1,128)}', space=vmem, size = 0x12000, scoped, tag = 'internal scratch']
  %s0 = inlined_call_operand.vmem [shape: f32[2,8,36], index: 0, kind: input, shape index: {}]
  %s1 = inlined_call_operand.vmem [shape: f32[16,8], index: 1, kind: input, shape index: {}]
  %s2 = inlined_call_operand.vmem [shape: f32[16,8], index: 2, kind: input, shape index: {}]
  %s3 = inlined_call_operand.vmem [shape: f32[16,8], index: 3, kind: input, shape index: {}]
  %s4 = inlined_call_operand.vmem [shape: f32[16,1], index: 4, kind: input, shape index: {}]
  %s5 = inlined_call_operand.vmem [shape: f32[8,8], index: 5, kind: input, shape index: {}]
  %s6 = inlined_call_operand.vmem [shape: f32[8,1], index: 6, kind: input, shape index: {}]
  %s7 = inlined_call_operand.vmem [shape: f32[8,8], index: 7, kind: input, shape index: {}]
  %s8 = inlined_call_operand.vmem [shape: f32[8,1], index: 8, kind: input, shape index: {}]
  %s9 = inlined_call_operand.hbm [shape: f32[2,8,32], index: 9, kind: output, shape index: {0}]
  %s10 = inlined_call_operand.hbm [shape: f32[2,8,32], index: 10, kind: output, shape index: {1}]
  %11 = xla_tuple %s9, %s10
  %s12 = sld [smem:[#allocation0]]
  $region77: #{tpu_custom_call.1} parent=0
    _
  %s14 = ssub.s32 1, %s12
  %s15 = scalar_select 0, %s14, %s12
  $region1: #{tpu_custom_call.1} parent=0
    #allocation2 [shape = 'u8[8192]{0}', space=vmem, size = 0x2000, scoped, tag = 'output window, operand 0']
    #allocation3 [shape = 's32[2]{0}', space=sflag, size = 0x8, scoped, tag = 'scoped memory for tpu_custom_call.1']
    #allocation4 [shape = 'u8[8192]{0}', space=vmem, size = 0x2000, scoped, tag = 'output window, operand 1']
    #allocation5 [shape = 's32[2]{0}', space=sflag, size = 0x8, scoped, tag = 'scoped memory for tpu_custom_call.1']
    %16 = vsyncpa [#allocation3], 0
    %s17 = scalar_lea.sflag [#allocation3], 1
    %18 = vsyncpa %s17, 0
    %19 = vsyncpa [#allocation5], 0
    %s20 = scalar_lea.sflag [#allocation5], 1
    %21 = vsyncpa %s20, 0
    loop: start=0, step=1, limit=4
    $region2: #{tpu_custom_call.1} parent=1 // loop_pre_header
      _
    $region3: #{tpu_custom_call.1} parent=1 // loop_header
      %s23 = sphi 0, %s27
      %p24 = scmp.ge.s32.totalorder %s23, 4
      %s33 = sphi 0, %s35
      %s36 = sphi 0, %s33
      %s37 = sphi 0, %s36
      %s53 = sphi 0, %s37
      %s57 = sphi 0, %s57
      %s59 = sphi 0, %s57
      %s60 = sphi 0, %s59
      %s74 = sphi 0, %s60
      %s78 = sphi 0, %s78
      %s80 = sphi 0, %s78
      %s81 = sphi 0, %s80
      %s95 = sphi 0, %s81
      %s99 = sphi 0, %s99
      %s101 = sphi 0, %s99
      %s102 = sphi 0, %s101
      %s116 = sphi 0, %s102
      %s120 = sphi 0, %s120
      %s122 = sphi 0, %s120
      %s123 = sphi 0, %s122
      %s137 = sphi 0, %s123
      %s141 = sphi 0, %s141
      %s143 = sphi 0, %s141
      %s144 = sphi 0, %s143
      %s158 = sphi 0, %s144
      %s162 = sphi 0, %s162
      %s164 = sphi 0, %s162
      %s165 = sphi 0, %s164
      %s179 = sphi 0, %s165
      %s183 = sphi 0, %s183
      %s185 = sphi 0, %s183
      %s186 = sphi 0, %s185
      %s200 = sphi 0, %s186
      %s204 = sphi 0, %s204
      %s206 = sphi 0, %s204
      %s207 = sphi 0, %s206
      %s221 = sphi 0, %s207
      %s227 = sphi 0, %s229
      %s230 = sphi 0, %s227
      %s231 = sphi 0, %s230
      %s247 = sphi 0, %s231
      %s253 = sphi 0, %s255
      %s256 = sphi 0, %s253
      %s257 = sphi 0, %s256
      %s273 = sphi 0, %s257
    $region4: #{tpu_custom_call.1} parent=1 // loop_header_branch
      %26 = sbr.rel (%p24) target = $region8
    $region5: #{tpu_custom_call.1} parent=1 // loop_body
      %s28 = ssub.s32 %s23, 1
      %s29 = ssub.s32 %s23, 2
      %s30 = sadd.s32 %s23, 1
      %s31 = ssub.s32 %s23, %s30
      %p32 = scmp.eq.s32.totalorder %s31, 0
      %s34 = sadd.s32 %s33, 1
      %s35 = scalar_select %p32, %s33, %s34
      %p38 = pneg %p32
      %p39 = scmp.eq.s32.totalorder %s23, 1
      %p40 = por %p38, %p39
      %p41 = scmp.ne.s32.totalorder %s33, %s36
      %p42 = scmp.eq.s32.totalorder %s23, 0
      %p43 = por %p41, %p42
      %p44 = scmp.ne.s32.totalorder %s33, %s36
      %p45 = scmp.eq.s32.totalorder %s28, 1
      %p46 = por %p44, %p45
      %p47 = scmp.ne.s32.totalorder %s36, %s37
      %p48 = scmp.eq.s32.totalorder %s28, 0
      %p49 = por %p47, %p48
      %p50 = scmp.ne.s32.totalorder %s36, %s37
      %p51 = scmp.eq.s32.totalorder %s29, 1
      %p52 = por %p50, %p51
      %p54 = scmp.ne.s32.totalorder %s37, %s53
      %p55 = scmp.eq.s32.totalorder %s29, 0
      %p56 = por %p54, %p55
      %s58 = sadd.s32 %s57, 1
      %p61 = scmp.eq.s32.totalorder %s23, 1
      %p62 = scmp.ne.s32.totalorder %s57, %s59
      %p63 = scmp.eq.s32.totalorder %s23, 0
      %p64 = por %p62, %p63
      %p65 = scmp.ne.s32.totalorder %s57, %s59
      %p66 = scmp.eq.s32.totalorder %s28, 1
      %p67 = por %p65, %p66
      %p68 = scmp.ne.s32.totalorder %s59, %s60
      %p69 = scmp.eq.s32.totalorder %s28, 0
      %p70 = por %p68, %p69
      %p71 = scmp.ne.s32.totalorder %s59, %s60
      %p72 = scmp.eq.s32.totalorder %s29, 1
      %p73 = por %p71, %p72
      %p75 = scmp.ne.s32.totalorder %s60, %s74
      %p76 = scmp.eq.s32.totalorder %s29, 0
      %p77 = por %p75, %p76
      %s79 = sadd.s32 %s78, 1
      %p82 = scmp.eq.s32.totalorder %s23, 1
      %p83 = scmp.ne.s32.totalorder %s78, %s80
      %p84 = scmp.eq.s32.totalorder %s23, 0
      %p85 = por %p83, %p84
      %p86 = scmp.ne.s32.totalorder %s78, %s80
      %p87 = scmp.eq.s32.totalorder %s28, 1
      %p88 = por %p86, %p87
      %p89 = scmp.ne.s32.totalorder %s80, %s81
      %p90 = scmp.eq.s32.totalorder %s28, 0
      %p91 = por %p89, %p90
      %p92 = scmp.ne.s32.totalorder %s80, %s81
      %p93 = scmp.eq.s32.totalorder %s29, 1
      %p94 = por %p92, %p93
      %p96 = scmp.ne.s32.totalorder %s81, %s95
      %p97 = scmp.eq.s32.totalorder %s29, 0
      %p98 = por %p96, %p97
      %s100 = sadd.s32 %s99, 1
      %p103 = scmp.eq.s32.totalorder %s23, 1
      %p104 = scmp.ne.s32.totalorder %s99, %s101
      %p105 = scmp.eq.s32.totalorder %s23, 0
      %p106 = por %p104, %p105
      %p107 = scmp.ne.s32.totalorder %s99, %s101
      %p108 = scmp.eq.s32.totalorder %s28, 1
      %p109 = por %p107, %p108
      %p110 = scmp.ne.s32.totalorder %s101, %s102
      %p111 = scmp.eq.s32.totalorder %s28, 0
      %p112 = por %p110, %p111
      %p113 = scmp.ne.s32.totalorder %s101, %s102
      %p114 = scmp.eq.s32.totalorder %s29, 1
      %p115 = por %p113, %p114
      %p117 = scmp.ne.s32.totalorder %s102, %s116
      %p118 = scmp.eq.s32.totalorder %s29, 0
      %p119 = por %p117, %p118
      %s121 = sadd.s32 %s120, 1
      %p124 = scmp.eq.s32.totalorder %s23, 1
      %p125 = scmp.ne.s32.totalorder %s120, %s122
      %p126 = scmp.eq.s32.totalorder %s23, 0
      %p127 = por %p125, %p126
      %p128 = scmp.ne.s32.totalorder %s120, %s122
      %p129 = scmp.eq.s32.totalorder %s28, 1
      %p130 = por %p128, %p129
      %p131 = scmp.ne.s32.totalorder %s122, %s123
      %p132 = scmp.eq.s32.totalorder %s28, 0
      %p133 = por %p131, %p132
      %p134 = scmp.ne.s32.totalorder %s122, %s123
      %p135 = scmp.eq.s32.totalorder %s29, 1
      %p136 = por %p134, %p135
      %p138 = scmp.ne.s32.totalorder %s123, %s137
      %p139 = scmp.eq.s32.totalorder %s29, 0
      %p140 = por %p138, %p139
      %s142 = sadd.s32 %s141, 1
      %p145 = scmp.eq.s32.totalorder %s23, 1
      %p146 = scmp.ne.s32.totalorder %s141, %s143
      %p147 = scmp.eq.s32.totalorder %s23, 0
      %p148 = por %p146, %p147
      %p149 = scmp.ne.s32.totalorder %s141, %s143
      %p150 = scmp.eq.s32.totalorder %s28, 1
      %p151 = por %p149, %p150
      %p152 = scmp.ne.s32.totalorder %s143, %s144
      %p153 = scmp.eq.s32.totalorder %s28, 0
      %p154 = por %p152, %p153
      %p155 = scmp.ne.s32.totalorder %s143, %s144
      %p156 = scmp.eq.s32.totalorder %s29, 1
      %p157 = por %p155, %p156
      %p159 = scmp.ne.s32.totalorder %s144, %s158
      %p160 = scmp.eq.s32.totalorder %s29, 0
      %p161 = por %p159, %p160
      %s163 = sadd.s32 %s162, 1
      %p166 = scmp.eq.s32.totalorder %s23, 1
      %p167 = scmp.ne.s32.totalorder %s162, %s164
      %p168 = scmp.eq.s32.totalorder %s23, 0
      %p169 = por %p167, %p168
      %p170 = scmp.ne.s32.totalorder %s162, %s164
      %p171 = scmp.eq.s32.totalorder %s28, 1
      %p172 = por %p170, %p171
      %p173 = scmp.ne.s32.totalorder %s164, %s165
      %p174 = scmp.eq.s32.totalorder %s28, 0
      %p175 = por %p173, %p174
      %p176 = scmp.ne.s32.totalorder %s164, %s165
      %p177 = scmp.eq.s32.totalorder %s29, 1
      %p178 = por %p176, %p177
      %p180 = scmp.ne.s32.totalorder %s165, %s179
      %p181 = scmp.eq.s32.totalorder %s29, 0
      %p182 = por %p180, %p181
      %s184 = sadd.s32 %s183, 1
      %p187 = scmp.eq.s32.totalorder %s23, 1
      %p188 = scmp.ne.s32.totalorder %s183, %s185
      %p189 = scmp.eq.s32.totalorder %s23, 0
      %p190 = por %p188, %p189
      %p191 = scmp.ne.s32.totalorder %s183, %s185
      %p192 = scmp.eq.s32.totalorder %s28, 1
      %p193 = por %p191, %p192
      %p194 = scmp.ne.s32.totalorder %s185, %s186
      %p195 = scmp.eq.s32.totalorder %s28, 0
      %p196 = por %p194, %p195
      %p197 = scmp.ne.s32.totalorder %s185, %s186
      %p198 = scmp.eq.s32.totalorder %s29, 1
      %p199 = por %p197, %p198
      %p201 = scmp.ne.s32.totalorder %s186, %s200
      %p202 = scmp.eq.s32.totalorder %s29, 0
      %p203 = por %p201, %p202
      %s205 = sadd.s32 %s204, 1
      %p208 = scmp.eq.s32.totalorder %s23, 1
      %p209 = scmp.ne.s32.totalorder %s204, %s206
      %p210 = scmp.eq.s32.totalorder %s23, 0
      %p211 = por %p209, %p210
      %p212 = scmp.ne.s32.totalorder %s204, %s206
      %p213 = scmp.eq.s32.totalorder %s28, 1
      %p214 = por %p212, %p213
      %p215 = scmp.ne.s32.totalorder %s206, %s207
      %p216 = scmp.eq.s32.totalorder %s28, 0
      %p217 = por %p215, %p216
      %p218 = scmp.ne.s32.totalorder %s206, %s207
      %p219 = scmp.eq.s32.totalorder %s29, 1
      %p220 = por %p218, %p219
      %p222 = scmp.ne.s32.totalorder %s207, %s221
      %p223 = scmp.eq.s32.totalorder %s29, 0
      %p224 = por %p222, %p223
      %s225 = ssub.s32 %s23, %s30
      %p226 = scmp.eq.s32.totalorder %s225, 0
      %s228 = sadd.s32 %s227, 1
      %s229 = scalar_select %p226, %s227, %s228
      %p232 = pneg %p226
      %p233 = scmp.eq.s32.totalorder %s23, 1
      %p234 = por %p232, %p233
      %p235 = scmp.ne.s32.totalorder %s227, %s230
      %p236 = scmp.eq.s32.totalorder %s23, 0
      %p237 = por %p235, %p236
      %p238 = scmp.ne.s32.totalorder %s227, %s230
      %p239 = scmp.eq.s32.totalorder %s28, 1
      %p240 = por %p238, %p239
      %p241 = scmp.ne.s32.totalorder %s230, %s231
      %p242 = scmp.eq.s32.totalorder %s28, 0
      %p243 = por %p241, %p242
      %p244 = scmp.ne.s32.totalorder %s230, %s231
      %p245 = scmp.eq.s32.totalorder %s29, 1
      %p246 = por %p244, %p245
      %p248 = scmp.ne.s32.totalorder %s231, %s247
      %p249 = scmp.eq.s32.totalorder %s29, 0
      %p250 = por %p248, %p249
      %s251 = ssub.s32 %s23, %s30
      %p252 = scmp.eq.s32.totalorder %s251, 0
      %s254 = sadd.s32 %s253, 1
      %s255 = scalar_select %p252, %s253, %s254
      %p258 = pneg %p252
      %p259 = scmp.eq.s32.totalorder %s23, 1
      %p260 = por %p258, %p259
      %p261 = scmp.ne.s32.totalorder %s253, %s256
      %p262 = scmp.eq.s32.totalorder %s23, 0
      %p263 = por %p261, %p262
      %p264 = scmp.ne.s32.totalorder %s253, %s256
      %p265 = scmp.eq.s32.totalorder %s28, 1
      %p266 = por %p264, %p265
      %p267 = scmp.ne.s32.totalorder %s256, %s257
      %p268 = scmp.eq.s32.totalorder %s28, 0
      %p269 = por %p267, %p268
      %p270 = scmp.ne.s32.totalorder %s256, %s257
      %p271 = scmp.eq.s32.totalorder %s29, 1
      %p272 = por %p270, %p271
      %p274 = scmp.ne.s32.totalorder %s257, %s273
      %p275 = scmp.eq.s32.totalorder %s29, 0
      %p276 = por %p274, %p275
      %p277 = scmp.le.s32.totalorder 1, %s23
      %p278 = scmp.lt.s32.totalorder %s23, 3
      %p279 = pnand %p277, %p278
      %p280 = pneg %p279
      // Predicated region
      $region9: #{tpu_custom_call.1} parent=5 // pred_check
        _
      $region10: #{tpu_custom_call.1} parent=5 // pred_check_branch
        %282 = sbr.rel (%p279) target = $region12
      $region11: #{tpu_custom_call.1} parent=5 // pred_region
        %s283 = ssub.s32 %s23, 1
        // Predicated region
        $region13: #{tpu_custom_call.1} parent=11 // pred_check
          %p284 = pneg %p70
        $region14: #{tpu_custom_call.1} parent=11 // pred_check_branch
          %286 = sbr.rel (%p284) target = $region16
        $region15: #{tpu_custom_call.1} parent=11 // pred_region
          _
        $region16: #{tpu_custom_call.1} parent=11 // pred_fallthru
          _
        // Predicated region
        $region17: #{tpu_custom_call.1} parent=11 // pred_check
          %p287 = pneg %p91
        $region18: #{tpu_custom_call.1} parent=11 // pred_check_branch
          %289 = sbr.rel (%p287) target = $region20
        $region19: #{tpu_custom_call.1} parent=11 // pred_region
          _
        $region20: #{tpu_custom_call.1} parent=11 // pred_fallthru
          _
        // Predicated region
        $region21: #{tpu_custom_call.1} parent=11 // pred_check
          %p290 = pneg %p112
        $region22: #{tpu_custom_call.1} parent=11 // pred_check_branch
          %292 = sbr.rel (%p290) target = $region24
        $region23: #{tpu_custom_call.1} parent=11 // pred_region
          _
        $region24: #{tpu_custom_call.1} parent=11 // pred_fallthru
          _
        // Predicated region
        $region25: #{tpu_custom_call.1} parent=11 // pred_check
          %p293 = pneg %p133
        $region26: #{tpu_custom_call.1} parent=11 // pred_check_branch
          %295 = sbr.rel (%p293) target = $region28
        $region27: #{tpu_custom_call.1} parent=11 // pred_region
          _
        $region28: #{tpu_custom_call.1} parent=11 // pred_fallthru
          _
        // Predicated region
        $region29: #{tpu_custom_call.1} parent=11 // pred_check
          %p296 = pneg %p154
        $region30: #{tpu_custom_call.1} parent=11 // pred_check_branch
          %298 = sbr.rel (%p296) target = $region32
        $region31: #{tpu_custom_call.1} parent=11 // pred_region
          _
        $region32: #{tpu_custom_call.1} parent=11 // pred_fallthru
          _
        // Predicated region
        $region33: #{tpu_custom_call.1} parent=11 // pred_check
          %p299 = pneg %p175
        $region34: #{tpu_custom_call.1} parent=11 // pred_check_branch
          %301 = sbr.rel (%p299) target = $region36
        $region35: #{tpu_custom_call.1} parent=11 // pred_region
          _
        $region36: #{tpu_custom_call.1} parent=11 // pred_fallthru
          _
        // Predicated region
        $region37: #{tpu_custom_call.1} parent=11 // pred_check
          %p302 = pneg %p196
        $region38: #{tpu_custom_call.1} parent=11 // pred_check_branch
          %304 = sbr.rel (%p302) target = $region40
        $region39: #{tpu_custom_call.1} parent=11 // pred_region
          _
        $region40: #{tpu_custom_call.1} parent=11 // pred_fallthru
          _
        // Predicated region
        $region41: #{tpu_custom_call.1} parent=11 // pred_check
          %p305 = pneg %p217
        $region42: #{tpu_custom_call.1} parent=11 // pred_check_branch
          %307 = sbr.rel (%p305) target = $region44
        $region43: #{tpu_custom_call.1} parent=11 // pred_region
          _
        $region44: #{tpu_custom_call.1} parent=11 // pred_fallthru
          _
      $region12: #{tpu_custom_call.1} parent=5 // pred_fallthru
        _
      %p308 = scmp.lt.s32.totalorder %s23, 2
      // Predicated region
      $region45: #{tpu_custom_call.1} parent=5 // pred_check
        %p309 = pneg %p308
      $region46: #{tpu_custom_call.1} parent=5 // pred_check_branch
        %311 = sbr.rel (%p309) target = $region48
      $region47: #{tpu_custom_call.1} parent=5 // pred_region
        // Predicated region
        $region49: #{tpu_custom_call.1} parent=47 // pred_check
          %p312 = pneg %p43
        $region50: #{tpu_custom_call.1} parent=47 // pred_check_branch
          %314 = sbr.rel (%p312) target = $region52
        $region51: #{tpu_custom_call.1} parent=47 // pred_region
          %p315 = scmp.lt.s32.totalorder %s23, 1
          %s316 = scalar_select %p315, %s23, 1
          %s317 = smul.addr %s316, 8
          %s318 = scalar_lea.vmem %s0, %s317
        $region52: #{tpu_custom_call.1} parent=47 // pred_fallthru
          _
      $region48: #{tpu_custom_call.1} parent=5 // pred_fallthru
        _
      %p319 = scmp.le.s32.totalorder 1, %s23
      %p320 = scmp.lt.s32.totalorder %s23, 3
      %p321 = pnand %p319, %p320
      %p322 = pneg %p321
      // Predicated region
      $region53: #{tpu_custom_call.1} parent=5 // pred_check
        _
      $region54: #{tpu_custom_call.1} parent=5 // pred_check_branch
        %324 = sbr.rel (%p321) target = $region56
      $region55: #{tpu_custom_call.1} parent=5 // pred_region
        %s325 = ssub.s32 %s23, 1
        %p326 = scmp.lt.s32.totalorder %s28, 1
        %s327 = scalar_select %p326, %s28, 1
        %s328 = smul.addr %s327, 8
        %s329 = scalar_lea.vmem %s0, %s328
        %p330 = pneg %p49
        %p331 = pneg %p46
        %p332 = pneg %p70
        %p333 = pneg %p67
        %p334 = pneg %p91
        %p335 = pneg %p88
        %p336 = pneg %p112
        %p337 = pneg %p109
        %p338 = pneg %p133
        %p339 = pneg %p130
        %p340 = pneg %p154
        %p341 = pneg %p151
        %p342 = pneg %p175
        %p343 = pneg %p172
        %p344 = pneg %p196
        %p345 = pneg %p193
        %p346 = pneg %p217
        %p347 = pneg %p214
        %p348 = pneg %p243
        %p349 = pneg %p240
        %s350 = sand.u32 %s230, 1
        %s351 = scalar_lea.sflag [#allocation3], %s350
        %s352 = sand.u32 %s230, 1
        %s353 = smul.addr %s352, 8
        %s354 = scalar_lea.vmem [#allocation2], %s353
        %p355 = pneg %p269
        %p356 = pneg %p266
        %s357 = sand.u32 %s256, 1
        %s358 = scalar_lea.sflag [#allocation5], %s357
        %s359 = sand.u32 %s256, 1
        %s360 = smul.addr %s359, 8
        %s361 = scalar_lea.vmem [#allocation4], %s360
        %p362 = scmp.lt.s32.totalorder %s28, 1
        %s363 = scalar_select %p362, %s28, 1
        %s364 = smul.addr %s363, 8
        %s365 = scalar_lea.vmem %s0, %s364
        %v366 = vld [vmem:[%s365] sm:$0xff]
        %v367 = vld [vmem:[%s1] sm:$0xff]
        %v368 = vld [vmem:[%s1 + $0x8] sm:$0xff]
        %v369 = vld [vmem:[%s2] sm:$0xff]
        %v370 = vld [vmem:[%s2 + $0x8] sm:$0xff]
        %372 = vrot.lane.b32.xlu0 %v366, 126
        %v373 = vpop.permute.xlu0 %372
        %vm375 = vcmask 64512
        %v377 = vsel %vm375, %v369, 0
        %v380 = vsel %vm375, %v370, 0
        %382 = vmatprep.subr.mxu0 0.0
        %383 = vmatpush1.msra.mxu0 %v373
        %384 = vmatprep.subr.mxu0 0.0
        %385 = vmatpush1.msra.mxu0 0.0
        %386 = vmatprep.subr.mxu0 0.0
        %387 = vmatpush1.msra.mxu0 0.0
        %388 = vmatprep.subr.mxu0 0.0
        %389 = vmatpush1.msra.mxu0 0.0
        %390 = vmatprep.subr.mxu0 0.0
        %391 = vmatpush1.msra.mxu0 0.0
        %392 = vmatprep.subr.mxu0 0.0
        %393 = vmatpush1.msra.mxu0 0.0
        %394 = vmatprep.subr.mxu0 0.0
        %395 = vmatpush1.msra.mxu0 0.0
        %396 = vmatprep.subr.mxu0 0.0
        %397 = vmatpush1.msra.mxu0 0.0
        %398 = vmatprep.subr.mxu0 0.0
        %399 = vmatpush1.msra.mxu0 0.0
        %400 = vmatprep.subr.mxu0 0.0
        %401 = vmatpush1.msra.mxu0 0.0
        %402 = vmatprep.subr.mxu0 0.0
        %403 = vmatpush1.msra.mxu0 0.0
        %404 = vmatprep.subr.mxu0 0.0
        %405 = vmatpush1.msra.mxu0 0.0
        %406 = vmatprep.subr.mxu0 0.0
        %407 = vmatpush1.msra.mxu0 0.0
        %408 = vmatprep.subr.mxu0 0.0
        %409 = vmatpush1.msra.mxu0 0.0
        %410 = vmatprep.subr.mxu0 0.0
        %411 = vmatpush1.msra.mxu0 0.0
        %412 = vmatprep.subr.mxu0 0.0
        %413 = vmatpush1.msra.mxu0 0.0
        %414 = vmatprep.subr.mxu0 0.0
        %415 = vmatpush1.msra.mxu0 0.0
        %416 = vmatprep.subr.mxu0 0.0
        %417 = vmatpush1.msra.mxu0 0.0
        %418 = vmatprep.subr.mxu0 0.0
        %419 = vmatpush1.msra.mxu0 0.0
        %420 = vmatprep.subr.mxu0 0.0
        %421 = vmatpush1.msra.mxu0 0.0
        %422 = vmatprep.subr.mxu0 0.0
        %423 = vmatpush1.msra.mxu0 0.0
        %424 = vmatprep.subr.mxu0 0.0
        %425 = vmatpush1.msra.mxu0 0.0
        %426 = vmatprep.subr.mxu0 0.0
        %427 = vmatpush1.msra.mxu0 0.0
        %428 = vmatprep.subr.mxu0 0.0
        %429 = vmatpush1.msra.mxu0 0.0
        %430 = vmatprep.subr.mxu0 0.0
        %431 = vmatpush1.msra.mxu0 0.0
        %432 = vmatprep.subr.mxu0 0.0
        %433 = vmatpush1.msra.mxu0 0.0
        %434 = vmatprep.subr.mxu0 0.0
        %435 = vmatpush1.msra.mxu0 0.0
        %436 = vmatprep.subr.mxu0 0.0
        %437 = vmatpush1.msra.mxu0 0.0
        %438 = vmatprep.subr.mxu0 0.0
        %439 = vmatpush1.msra.mxu0 0.0
        %440 = vmatprep.subr.mxu0 0.0
        %441 = vmatpush1.msra.mxu0 0.0
        %442 = vmatprep.subr.mxu0 0.0
        %443 = vmatpush1.msra.mxu0 0.0
        %444 = vmatprep.subr.mxu0 0.0
        %445 = vmatpush1.msra.mxu0 0.0
        %446 = vmatprep.mubr.f32.mxu0 0.0
        %447 = vmatmul.mubr.f32.gmra.mrb[0].mxu0 %v377
        %v448 = vpop.f32.mrb[0].mxu0
        %v449 = vadd.f32 0.0, %v448
        %v450 = vpop.f32.mrb[0].mxu0
        %451 = vmatprep.mubr.f32.mxu0 0.0
        %452 = vmatmul.mubr.f32.gmra.mrb[0].mxu0 %v380
        %v453 = vpop.f32.mrb[0].mxu0
        %v454 = vadd.f32 0.0, %v453
        %v455 = vpop.f32.mrb[0].mxu0
        %456 = vdwg.mxu0
        %v458 = vsel %vm375, %v367, 0
        %v461 = vsel %vm375, %v368, 0
        %463 = vmatprep.subr.mxu0 0.0
        %464 = vmatpush1.msra.mxu0 %v366
        %465 = vmatprep.subr.mxu0 0.0
        %466 = vmatpush1.msra.mxu0 0.0
        %467 = vmatprep.subr.mxu0 0.0
        %468 = vmatpush1.msra.mxu0 0.0
        %469 = vmatprep.subr.mxu0 0.0
        %470 = vmatpush1.msra.mxu0 0.0
        %471 = vmatprep.subr.mxu0 0.0
        %472 = vmatpush1.msra.mxu0 0.0
        %473 = vmatprep.subr.mxu0 0.0
        %474 = vmatpush1.msra.mxu0 0.0
        %475 = vmatprep.subr.mxu0 0.0
        %476 = vmatpush1.msra.mxu0 0.0
        %477 = vmatprep.subr.mxu0 0.0
        %478 = vmatpush1.msra.mxu0 0.0
        %479 = vmatprep.subr.mxu0 0.0
        %480 = vmatpush1.msra.mxu0 0.0
        %481 = vmatprep.subr.mxu0 0.0
        %482 = vmatpush1.msra.mxu0 0.0
        %483 = vmatprep.subr.mxu0 0.0
        %484 = vmatpush1.msra.mxu0 0.0
        %485 = vmatprep.subr.mxu0 0.0
        %486 = vmatpush1.msra.mxu0 0.0
        %487 = vmatprep.subr.mxu0 0.0
        %488 = vmatpush1.msra.mxu0 0.0
        %489 = vmatprep.subr.mxu0 0.0
        %490 = vmatpush1.msra.mxu0 0.0
        %491 = vmatprep.subr.mxu0 0.0
        %492 = vmatpush1.msra.mxu0 0.0
        %493 = vmatprep.subr.mxu0 0.0
        %494 = vmatpush1.msra.mxu0 0.0
        %495 = vmatprep.subr.mxu0 0.0
        %496 = vmatpush1.msra.mxu0 0.0
        %497 = vmatprep.subr.mxu0 0.0
        %498 = vmatpush1.msra.mxu0 0.0
        %499 = vmatprep.subr.mxu0 0.0
        %500 = vmatpush1.msra.mxu0 0.0
        %501 = vmatprep.subr.mxu0 0.0
        %502 = vmatpush1.msra.mxu0 0.0
        %503 = vmatprep.subr.mxu0 0.0
        %504 = vmatpush1.msra.mxu0 0.0
        %505 = vmatprep.subr.mxu0 0.0
        %506 = vmatpush1.msra.mxu0 0.0
        %507 = vmatprep.subr.mxu0 0.0
        %508 = vmatpush1.msra.mxu0 0.0
        %509 = vmatprep.subr.mxu0 0.0
        %510 = vmatpush1.msra.mxu0 0.0
        %511 = vmatprep.subr.mxu0 0.0
        %512 = vmatpush1.msra.mxu0 0.0
        %513 = vmatprep.subr.mxu0 0.0
        %514 = vmatpush1.msra.mxu0 0.0
        %515 = vmatprep.subr.mxu0 0.0
        %516 = vmatpush1.msra.mxu0 0.0
        %517 = vmatprep.subr.mxu0 0.0
        %518 = vmatpush1.msra.mxu0 0.0
        %519 = vmatprep.subr.mxu0 0.0
        %520 = vmatpush1.msra.mxu0 0.0
        %521 = vmatprep.subr.mxu0 0.0
        %522 = vmatpush1.msra.mxu0 0.0
        %523 = vmatprep.subr.mxu0 0.0
        %524 = vmatpush1.msra.mxu0 0.0
        %525 = vmatprep.subr.mxu0 0.0
        %526 = vmatpush1.msra.mxu0 0.0
        %527 = vmatprep.mubr.f32.mxu0 0.0
        %528 = vmatmul.mubr.f32.gmra.mrb[0].mxu0 %v458
        %v529 = vpop.f32.mrb[0].mxu0
        %v530 = vadd.f32 %v449, %v529
        %v531 = vpop.f32.mrb[0].mxu0
        %532 = vmatprep.mubr.f32.mxu0 0.0
        %533 = vmatmul.mubr.f32.gmra.mrb[0].mxu0 %v461
        %v534 = vpop.f32.mrb[0].mxu0
        %v535 = vadd.f32 %v454, %v534
        %v536 = vpop.f32.mrb[0].mxu0
        %537 = vdwg.mxu0
        %v538 = vld [vmem:[%s3] sm:$0xff]
        %v539 = vld [vmem:[%s3 + $0x8] sm:$0xff]
        %540 = vrot.lane.b32.xlu0 %v366, 124
        %v541 = vpop.permute.xlu0 %540
        %v544 = vsel %vm375, %v538, 0
        %v547 = vsel %vm375, %v539, 0
        %549 = vmatprep.subr.mxu0 0.0
        %550 = vmatpush1.msra.mxu0 %v541
        %551 = vmatprep.subr.mxu0 0.0
        %552 = vmatpush1.msra.mxu0 0.0
        %553 = vmatprep.subr.mxu0 0.0
        %554 = vmatpush1.msra.mxu0 0.0
        %555 = vmatprep.subr.mxu0 0.0
        %556 = vmatpush1.msra.mxu0 0.0
        %557 = vmatprep.subr.mxu0 0.0
        %558 = vmatpush1.msra.mxu0 0.0
        %559 = vmatprep.subr.mxu0 0.0
        %560 = vmatpush1.msra.mxu0 0.0
        %561 = vmatprep.subr.mxu0 0.0
        %562 = vmatpush1.msra.mxu0 0.0
        %563 = vmatprep.subr.mxu0 0.0
        %564 = vmatpush1.msra.mxu0 0.0
        %565 = vmatprep.subr.mxu0 0.0
        %566 = vmatpush1.msra.mxu0 0.0
        %567 = vmatprep.subr.mxu0 0.0
        %568 = vmatpush1.msra.mxu0 0.0
        %569 = vmatprep.subr.mxu0 0.0
        %570 = vmatpush1.msra.mxu0 0.0
        %571 = vmatprep.subr.mxu0 0.0
        %572 = vmatpush1.msra.mxu0 0.0
        %573 = vmatprep.subr.mxu0 0.0
        %574 = vmatpush1.msra.mxu0 0.0
        %575 = vmatprep.subr.mxu0 0.0
        %576 = vmatpush1.msra.mxu0 0.0
        %577 = vmatprep.subr.mxu0 0.0
        %578 = vmatpush1.msra.mxu0 0.0
        %579 = vmatprep.subr.mxu0 0.0
        %580 = vmatpush1.msra.mxu0 0.0
        %581 = vmatprep.subr.mxu0 0.0
        %582 = vmatpush1.msra.mxu0 0.0
        %583 = vmatprep.subr.mxu0 0.0
        %584 = vmatpush1.msra.mxu0 0.0
        %585 = vmatprep.subr.mxu0 0.0
        %586 = vmatpush1.msra.mxu0 0.0
        %587 = vmatprep.subr.mxu0 0.0
        %588 = vmatpush1.msra.mxu0 0.0
        %589 = vmatprep.subr.mxu0 0.0
        %590 = vmatpush1.msra.mxu0 0.0
        %591 = vmatprep.subr.mxu0 0.0
        %592 = vmatpush1.msra.mxu0 0.0
        %593 = vmatprep.subr.mxu0 0.0
        %594 = vmatpush1.msra.mxu0 0.0
        %595 = vmatprep.subr.mxu0 0.0
        %596 = vmatpush1.msra.mxu0 0.0
        %597 = vmatprep.subr.mxu0 0.0
        %598 = vmatpush1.msra.mxu0 0.0
        %599 = vmatprep.subr.mxu0 0.0
        %600 = vmatpush1.msra.mxu0 0.0
        %601 = vmatprep.subr.mxu0 0.0
        %602 = vmatpush1.msra.mxu0 0.0
        %603 = vmatprep.subr.mxu0 0.0
        %604 = vmatpush1.msra.mxu0 0.0
        %605 = vmatprep.subr.mxu0 0.0
        %606 = vmatpush1.msra.mxu0 0.0
        %607 = vmatprep.subr.mxu0 0.0
        %608 = vmatpush1.msra.mxu0 0.0
        %609 = vmatprep.subr.mxu0 0.0
        %610 = vmatpush1.msra.mxu0 0.0
        %611 = vmatprep.subr.mxu0 0.0
        %612 = vmatpush1.msra.mxu0 0.0
        %613 = vmatprep.mubr.f32.mxu0 0.0
        %614 = vmatmul.mubr.f32.gmra.mrb[0].mxu0 %v544
        %v615 = vpop.f32.mrb[0].mxu0
        %v616 = vadd.f32 0.0, %v615
        %v617 = vpop.f32.mrb[0].mxu0
        %618 = vmatprep.mubr.f32.mxu0 0.0
        %619 = vmatmul.mubr.f32.gmra.mrb[0].mxu0 %v547
        %v620 = vpop.f32.mrb[0].mxu0
        %v621 = vadd.f32 0.0, %v620
        %v622 = vpop.f32.mrb[0].mxu0
        %623 = vdwg.mxu0
        %v624 = vadd.f32 %v530, %v616
        %v625 = vadd.f32 %v535, %v621
        %v626 = vld [vmem:[%s4] sm:$0xff]
        %v627 = vld [vmem:[%s4 + $0x8] sm:$0xff]
        %629 = vset.pattern.permute.xlu0 0
        %630 = vperm.xlu0 %629, %v626
        %v631 = vpop.permute.xlu0 %630
        %634 = vset.pattern.permute.xlu0 0
        %635 = vperm.xlu0 %634, %v627
        %v636 = vpop.permute.xlu0 %635
        %v638 = vadd.f32 %v624, %v631
        %v639 = vadd.f32 %v625, %v636
        %v640 = vmul.f32 %v638, 0.5
        %v641 = vtanh.pop %v640
        %v642 = vadd.f32 %v641, 1.0
        %v643 = vmul.f32 %v642, 0.5
        %v644 = vtanh.pop %v639
        %v645 = vmul.f32 %v643, %v644
        %v646 = vld [vmem:[%s5] sm:$0xff]
        %v647 = vld [vmem:[%s6] sm:$0xff]
        %649 = vset.pattern.permute.xlu0 0
        %650 = vperm.xlu0 %649, %v647
        %v651 = vpop.permute.xlu0 %650
        %v654 = vsel %vm375, %v646, 0
        %656 = vmatprep.subr.mxu0 0.0
        %657 = vmatpush1.msra.mxu0 %v645
        %658 = vmatprep.subr.mxu0 0.0
        %659 = vmatpush1.msra.mxu0 0.0
        %660 = vmatprep.subr.mxu0 0.0
        %661 = vmatpush1.msra.mxu0 0.0
        %662 = vmatprep.subr.mxu0 0.0
        %663 = vmatpush1.msra.mxu0 0.0
        %664 = vmatprep.subr.mxu0 0.0
        %665 = vmatpush1.msra.mxu0 0.0
        %666 = vmatprep.subr.mxu0 0.0
        %667 = vmatpush1.msra.mxu0 0.0
        %668 = vmatprep.subr.mxu0 0.0
        %669 = vmatpush1.msra.mxu0 0.0
        %670 = vmatprep.subr.mxu0 0.0
        %671 = vmatpush1.msra.mxu0 0.0
        %672 = vmatprep.subr.mxu0 0.0
        %673 = vmatpush1.msra.mxu0 0.0
        %674 = vmatprep.subr.mxu0 0.0
        %675 = vmatpush1.msra.mxu0 0.0
        %676 = vmatprep.subr.mxu0 0.0
        %677 = vmatpush1.msra.mxu0 0.0
        %678 = vmatprep.subr.mxu0 0.0
        %679 = vmatpush1.msra.mxu0 0.0
        %680 = vmatprep.subr.mxu0 0.0
        %681 = vmatpush1.msra.mxu0 0.0
        %682 = vmatprep.subr.mxu0 0.0
        %683 = vmatpush1.msra.mxu0 0.0
        %684 = vmatprep.subr.mxu0 0.0
        %685 = vmatpush1.msra.mxu0 0.0
        %686 = vmatprep.subr.mxu0 0.0
        %687 = vmatpush1.msra.mxu0 0.0
        %688 = vmatprep.subr.mxu0 0.0
        %689 = vmatpush1.msra.mxu0 0.0
        %690 = vmatprep.subr.mxu0 0.0
        %691 = vmatpush1.msra.mxu0 0.0
        %692 = vmatprep.subr.mxu0 0.0
        %693 = vmatpush1.msra.mxu0 0.0
        %694 = vmatprep.subr.mxu0 0.0
        %695 = vmatpush1.msra.mxu0 0.0
        %696 = vmatprep.subr.mxu0 0.0
        %697 = vmatpush1.msra.mxu0 0.0
        %698 = vmatprep.subr.mxu0 0.0
        %699 = vmatpush1.msra.mxu0 0.0
        %700 = vmatprep.subr.mxu0 0.0
        %701 = vmatpush1.msra.mxu0 0.0
        %702 = vmatprep.subr.mxu0 0.0
        %703 = vmatpush1.msra.mxu0 0.0
        %704 = vmatprep.subr.mxu0 0.0
        %705 = vmatpush1.msra.mxu0 0.0
        %706 = vmatprep.subr.mxu0 0.0
        %707 = vmatpush1.msra.mxu0 0.0
        %708 = vmatprep.subr.mxu0 0.0
        %709 = vmatpush1.msra.mxu0 0.0
        %710 = vmatprep.subr.mxu0 0.0
        %711 = vmatpush1.msra.mxu0 0.0
        %712 = vmatprep.subr.mxu0 0.0
        %713 = vmatpush1.msra.mxu0 0.0
        %714 = vmatprep.subr.mxu0 0.0
        %715 = vmatpush1.msra.mxu0 0.0
        %716 = vmatprep.subr.mxu0 0.0
        %717 = vmatpush1.msra.mxu0 0.0
        %718 = vmatprep.subr.mxu0 0.0
        %719 = vmatpush1.msra.mxu0 0.0
        %720 = vmatprep.mubr.f32.mxu0 0.0
        %721 = vmatmul.mubr.f32.gmra.mrb[0].mxu0 %v654
        %v722 = vpop.f32.mrb[0].mxu0
        %v723 = vadd.f32 %v651, %v722
        %v724 = vpop.f32.mrb[0].mxu0
        %725 = vdwg.mxu0
        %v726 = vld [vmem:[%s7] sm:$0xff]
        %v727 = vld [vmem:[%s8] sm:$0xff]
        %729 = vset.pattern.permute.xlu0 0
        %730 = vperm.xlu0 %729, %v727
        %v731 = vpop.permute.xlu0 %730
        %v734 = vsel %vm375, %v726, 0
        %736 = vmatprep.subr.mxu0 0.0
        %737 = vmatpush1.msra.mxu0 %v645
        %738 = vmatprep.subr.mxu0 0.0
        %739 = vmatpush1.msra.mxu0 0.0
        %740 = vmatprep.subr.mxu0 0.0
        %741 = vmatpush1.msra.mxu0 0.0
        %742 = vmatprep.subr.mxu0 0.0
        %743 = vmatpush1.msra.mxu0 0.0
        %744 = vmatprep.subr.mxu0 0.0
        %745 = vmatpush1.msra.mxu0 0.0
        %746 = vmatprep.subr.mxu0 0.0
        %747 = vmatpush1.msra.mxu0 0.0
        %748 = vmatprep.subr.mxu0 0.0
        %749 = vmatpush1.msra.mxu0 0.0
        %750 = vmatprep.subr.mxu0 0.0
        %751 = vmatpush1.msra.mxu0 0.0
        %752 = vmatprep.subr.mxu0 0.0
        %753 = vmatpush1.msra.mxu0 0.0
        %754 = vmatprep.subr.mxu0 0.0
        %755 = vmatpush1.msra.mxu0 0.0
        %756 = vmatprep.subr.mxu0 0.0
        %757 = vmatpush1.msra.mxu0 0.0
        %758 = vmatprep.subr.mxu0 0.0
        %759 = vmatpush1.msra.mxu0 0.0
        %760 = vmatprep.subr.mxu0 0.0
        %761 = vmatpush1.msra.mxu0 0.0
        %762 = vmatprep.subr.mxu0 0.0
        %763 = vmatpush1.msra.mxu0 0.0
        %764 = vmatprep.subr.mxu0 0.0
        %765 = vmatpush1.msra.mxu0 0.0
        %766 = vmatprep.subr.mxu0 0.0
        %767 = vmatpush1.msra.mxu0 0.0
        %768 = vmatprep.subr.mxu0 0.0
        %769 = vmatpush1.msra.mxu0 0.0
        %770 = vmatprep.subr.mxu0 0.0
        %771 = vmatpush1.msra.mxu0 0.0
        %772 = vmatprep.subr.mxu0 0.0
        %773 = vmatpush1.msra.mxu0 0.0
        %774 = vmatprep.subr.mxu0 0.0
        %775 = vmatpush1.msra.mxu0 0.0
        %776 = vmatprep.subr.mxu0 0.0
        %777 = vmatpush1.msra.mxu0 0.0
        %778 = vmatprep.subr.mxu0 0.0
        %779 = vmatpush1.msra.mxu0 0.0
        %780 = vmatprep.subr.mxu0 0.0
        %781 = vmatpush1.msra.mxu0 0.0
        %782 = vmatprep.subr.mxu0 0.0
        %783 = vmatpush1.msra.mxu0 0.0
        %784 = vmatprep.subr.mxu0 0.0
        %785 = vmatpush1.msra.mxu0 0.0
        %786 = vmatprep.subr.mxu0 0.0
        %787 = vmatpush1.msra.mxu0 0.0
        %788 = vmatprep.subr.mxu0 0.0
        %789 = vmatpush1.msra.mxu0 0.0
        %790 = vmatprep.subr.mxu0 0.0
        %791 = vmatpush1.msra.mxu0 0.0
        %792 = vmatprep.subr.mxu0 0.0
        %793 = vmatpush1.msra.mxu0 0.0
        %794 = vmatprep.subr.mxu0 0.0
        %795 = vmatpush1.msra.mxu0 0.0
        %796 = vmatprep.subr.mxu0 0.0
        %797 = vmatpush1.msra.mxu0 0.0
        %798 = vmatprep.subr.mxu0 0.0
        %799 = vmatpush1.msra.mxu0 0.0
        %800 = vmatprep.mubr.f32.mxu0 0.0
        %801 = vmatmul.mubr.f32.gmra.mrb[0].mxu0 %v734
        %v802 = vpop.f32.mrb[0].mxu0
        %v803 = vadd.f32 %v731, %v802
        %v804 = vpop.f32.mrb[0].mxu0
        %805 = vdwg.mxu0
        %807 = vrot.lane.b32.xlu0 %v723, 2
        %v808 = vpop.permute.xlu0 %807
        %v810 = vadd.f32 %v366, %v808
        %v811 = vmul.f32 %v810, 0.70710677
        %813 = vrot.lane.b32.xlu0 %v811, 126
        %v814 = vpop.permute.xlu0 %813
        %vm816 = vcmask 261120
        %817 = vst.msk [vmem:[%s354] sm:$0xff] %vm816, %v814
        %818 = vst.msk [vmem:[%s361] sm:$0xff] %vm816, %v803
        %s819 = sand.u32 %s230, 1
        %s820 = scalar_lea.sflag [#allocation3], %s819
        %s821 = sand.u32 %s230, 1
        %s822 = smul.addr %s821, 8
        %s823 = scalar_lea.vmem [#allocation2], %s822
        %s824 = sand.u32 %s256, 1
        %s825 = scalar_lea.sflag [#allocation5], %s824
        %s826 = sand.u32 %s256, 1
        %s827 = smul.addr %s826, 8
        %s828 = scalar_lea.vmem [#allocation4], %s827
        // Predicated region
        $region57: #{tpu_custom_call.1} parent=55 // pred_check
          %p829 = pneg %p240
        $region58: #{tpu_custom_call.1} parent=55 // pred_check_branch
          %831 = sbr.rel (%p829) target = $region60
        $region59: #{tpu_custom_call.1} parent=55 // pred_region
          %s833 = ssub.s32 128, 128
          %834 = vsyncadd %s820, %s833
          %s835 = smul.addr %s28, 128
          %s836 = scalar_lea.hbm %s9, %s835
          %s838 = sshll.u32 %s823, 4
          %s839 = int_to_ptr.vmem [resolvable:$true] %s838
          %841 = dma.vmem_to_hbm [thread:$0]  %s839, 128, %s836, %s820
        $region60: #{tpu_custom_call.1} parent=55 // pred_fallthru
          _
        // Predicated region
        $region61: #{tpu_custom_call.1} parent=55 // pred_check
          %p842 = pneg %p266
        $region62: #{tpu_custom_call.1} parent=55 // pred_check_branch
          %844 = sbr.rel (%p842) target = $region64
        $region63: #{tpu_custom_call.1} parent=55 // pred_region
          %s846 = ssub.s32 128, 128
          %847 = vsyncadd %s825, %s846
          %s848 = smul.addr %s28, 128
          %s849 = scalar_lea.hbm %s10, %s848
          %s851 = sshll.u32 %s828, 4
          %s852 = int_to_ptr.vmem [resolvable:$true] %s851
          %854 = dma.vmem_to_hbm [thread:$0]  %s852, 128, %s849, %s825
        $region64: #{tpu_custom_call.1} parent=55 // pred_fallthru
          _
      $region56: #{tpu_custom_call.1} parent=5 // pred_fallthru
        _
      %p855 = scmp.le.s32.totalorder 2, %s23
      // Predicated region
      $region65: #{tpu_custom_call.1} parent=5 // pred_check
        %p856 = pneg %p855
      $region66: #{tpu_custom_call.1} parent=5 // pred_check_branch
        %858 = sbr.rel (%p856) target = $region68
      $region67: #{tpu_custom_call.1} parent=5 // pred_region
        %s859 = ssub.s32 %s23, 2
        // Predicated region
        $region69: #{tpu_custom_call.1} parent=67 // pred_check
          %p860 = pneg %p246
        $region70: #{tpu_custom_call.1} parent=67 // pred_check_branch
          %862 = sbr.rel (%p860) target = $region72
        $region71: #{tpu_custom_call.1} parent=67 // pred_region
          %s863 = sand.u32 %s231, 1
          %s864 = scalar_lea.sflag [#allocation3], %s863
          %s865 = sand.u32 %s231, 1
          %s866 = smul.addr %s865, 8
          %s867 = scalar_lea.vmem [#allocation2], %s866
          %868 = dma.done %s864, 128
        $region72: #{tpu_custom_call.1} parent=67 // pred_fallthru
          _
        // Predicated region
        $region73: #{tpu_custom_call.1} parent=67 // pred_check
          %p869 = pneg %p272
        $region74: #{tpu_custom_call.1} parent=67 // pred_check_branch
          %871 = sbr.rel (%p869) target = $region76
        $region75: #{tpu_custom_call.1} parent=67 // pred_region
          %s872 = sand.u32 %s257, 1
          %s873 = scalar_lea.sflag [#allocation5], %s872
          %s874 = sand.u32 %s257, 1
          %s875 = smul.addr %s874, 8
          %s876 = scalar_lea.vmem [#allocation4], %s875
          %877 = dma.done %s873, 128
        $region76: #{tpu_custom_call.1} parent=67 // pred_fallthru
          _
      $region68: #{tpu_custom_call.1} parent=5 // pred_fallthru
        _
    $region6: #{tpu_custom_call.1} parent=1 // loop_footer
      %s27 = sadd.s32 1, %s23
    $region7: #{tpu_custom_call.1} parent=1 // loop_footer_branch
      %22 = sbr.rel target = $region3
    $region8: #{tpu_custom_call.1} parent=1 // loop_exit
      _
    %878 = vsyncpa [#allocation3], 1
    %s879 = scalar_lea.sflag [#allocation3], 1
    %880 = vsyncpa %s879, 1
    %881 = vsyncpa [#allocation5], 1
    %s882 = scalar_lea.sflag [#allocation5], 1
    %883 = vsyncpa %s882, 1

</llo_original>
